<compile_context>
chip_gen: v7x
topology: tpu7x:2x2x1
jax: 0.10.0
libtpu: 0.0.40
codegen_flags: <defaults>
</compile_context>

<pallas_src>
import functools
import math
import re

import jax
import jax.numpy as jnp
from jax.experimental import pallas as pl
from jax.experimental.pallas import tpu as pltpu

_MIB = 1024 * 1024


# ----------------------------------------------------------------------------- helpers
def _round_up(n, m):
    return ((n + m - 1) // m) * m


def _tpu_generation():
    try:
        kind = str(jax.devices()[0].device_kind).lower()
    except Exception:
        return None
    m = re.search(r"(\d+)", kind)
    return int(m.group(1)) if m else None


def _vmem_capacity_bytes(gen):
    try:
        cap = getattr(pltpu.get_tpu_info(), "vmem_capacity_bytes", None)
        if cap:
            return int(cap)
    except Exception:
        pass
    if gen is not None and gen <= 3:
        return 16 * _MIB
    if gen is not None and 4 <= gen <= 6:
        return 128 * _MIB
    return 64 * _MIB  # v7x-class / unknown: be conservative


def _vmem_budget_and_limit(gen):
    cap = _vmem_capacity_bytes(gen)
    limit = max(8 * _MIB, min(cap - 8 * _MIB, 100 * _MIB))   # leave Mosaic headroom
    budget = max(limit - 8 * _MIB, limit * 3 // 4)
    return budget, limit


def default_ew_dtype(gen=None):
    """Element-wise dtype for bias-add/LeakyReLU: bf16 on v6e+/v7x (bf16 VPU), else f32."""
    if gen is None:
        gen = _tpu_generation()
    return jnp.bfloat16 if (gen is not None and gen >= 6) else jnp.float32


def _weight_vmem_bytes(D, H, wbuf):
    Dp, Hp = _round_up(D, 128), _round_up(H, 128)
    w = _round_up(D, 16) * Hp * 2 + _round_up(H, 16) * Dp * 2     # bf16 w1, w2 (padded)
    small = 8 * (3 * Dp + Hp) * 4                                  # gamma/beta/b2 + b1, f32
    return wbuf * (w + small)


def _per_row_vmem_bytes(D, H, x_itemsize, ew_itemsize, lane_dense):
    Dp, Hp = _round_up(D, 128), _round_up(H, 128)
    d_tile = D if lane_dense else Dp
    tiles = 4 * d_tile * x_itemsize                  # double-buffered x + out tiles
    interm = 12 * Dp + (6 + 2 * ew_itemsize) * Hp    # xn/y (f32 + bf16), h (+ bf16 copy)
    return tiles + interm


def _pick_rows(M, gran_min, gran_pref, max_rows_by_vmem, gen):
    cap = min(2048, _round_up(M, gran_min))
    by_vmem = max(gran_min, (max_rows_by_vmem // gran_min) * gran_min)
    cap = min(cap, by_vmem)
    if cap >= gran_pref:
        tm = (cap // gran_pref) * gran_pref
    else:
        tm = cap
    tm = max(gran_min, tm)
    # v7x-class: 2 TensorCores share the "parallel" grid axis -> want >= 2 grid steps.
    if gen is not None and gen >= 7 and tm >= M and M > gran_min:
        tm = min(tm, max(gran_min, _round_up(-(-M // 2), gran_min)))
    return tm


# ----------------------------------------------------------------------------- kernel
def _prenorm_ffn_kernel(x_ref, gamma_ref, beta_ref, w1_ref, b1_ref, w2_ref, b2_ref,
                        o_ref, *, eps, ew_dtype, fold):
    xin = x_ref[...]
    if fold is not None:
        xin = xin.reshape(fold)               # lane-dense (TR, 128) -> logical (tm, D)
    x = xin.astype(jnp.float32)

    # LayerNorm (PyTorch semantics: biased variance, eps inside rsqrt) in f32.
    mu = jnp.mean(x, axis=-1, keepdims=True)
    xc = x - mu
    var = jnp.mean(xc * xc, axis=-1, keepdims=True)
    xn = xc * jax.lax.rsqrt(var + eps)
    xn = xn * gamma_ref[...] + beta_ref[...]

    # FeedForward: bf16 at the MXU, f32 accumulation.
    h = jnp.dot(xn.astype(jnp.bfloat16), w1_ref[...],
                preferred_element_type=jnp.float32)
    h = h.astype(ew_dtype) + b1_ref[...].astype(ew_dtype)
    h = jnp.maximum(h, 0.2 * h)               # LeakyReLU(0.2)
    y = jnp.dot(h.astype(jnp.bfloat16), w2_ref[...],
                preferred_element_type=jnp.float32) + b2_ref[...]
    # Dropout(p=0.0) is an exact identity.
    y = y.astype(o_ref.dtype)
    if fold is not None:
        y = y.reshape(o_ref.shape)            # back to lane-dense (TR, 128) for the store
    o_ref[...] = y


# ----------------------------------------------------------------------------- wrapper
def _run_pallas(x2, gamma2, beta2, w1_b, b1_2, w2_b, b2_2, *, M, D, H, tm,
                lane_dense, weight_buffers, ew_dtype, eps, vmem_limit):
    out_dtype = x2.dtype
    wmode = {} if weight_buffers is None else {"pipeline_mode": pl.Buffered(weight_buffers)}

    if lane_dense:
        F = (M * D) // 128
        TR = (tm * D) // 128
        x_in = x2.reshape(F, 128)
        fold = (tm, D)
        x_spec = pl.BlockSpec((TR, 128), lambda i: (i, 0))
        o_spec = pl.BlockSpec((TR, 128), lambda i: (i, 0))
        out_shape = jax.ShapeDtypeStruct((F, 128), out_dtype)
        grid = (pl.cdiv(F, TR),)
    else:
        x_in = x2
        fold = None
        x_spec = pl.BlockSpec((tm, D), lambda i: (i, 0))
        o_spec = pl.BlockSpec((tm, D), lambda i: (i, 0))
        out_shape = jax.ShapeDtypeStruct((M, D), out_dtype)
        grid = (pl.cdiv(M, tm),)

    cost = pl.CostEstimate(
        flops=2 * M * D * H * 2 + 10 * M * D,
        transcendentals=M,                                    # one rsqrt per row
        bytes_accessed=x2.dtype.itemsize * M * D * 2 + 2 * (D * H + H * D) + 4 * (3 * D + H),
    )

    out = pl.pallas_call(
        functools.partial(_prenorm_ffn_kernel, eps=eps, ew_dtype=ew_dtype, fold=fold),
        out_shape=out_shape,
        grid_spec=pltpu.PrefetchScalarGridSpec(
            num_scalar_prefetch=0,
            grid=grid,
            in_specs=[
                x_spec,                                               # x rows
                pl.BlockSpec((1, D), lambda i: (0, 0), **wmode),      # gamma (resident)
                pl.BlockSpec((1, D), lambda i: (0, 0), **wmode),      # beta  (resident)
                pl.BlockSpec((D, H), lambda i: (0, 0), **wmode),      # w1    (resident)
                pl.BlockSpec((1, H), lambda i: (0, 0), **wmode),      # b1
                pl.BlockSpec((H, D), lambda i: (0, 0), **wmode),      # w2    (resident)
                pl.BlockSpec((1, D), lambda i: (0, 0), **wmode),      # b2
            ],
            out_specs=o_spec,
        ),
        compiler_params=pltpu.CompilerParams(
            dimension_semantics=("parallel",),
            vmem_limit_bytes=int(vmem_limit),
        ),
        cost_estimate=cost,
    )(x_in, gamma2, beta2, w1_b, b1_2, w2_b, b2_2)

    if lane_dense:
        out = out.reshape(M, D)
    return out


def prenorm_feedforward(x, gamma, beta, w1, b1, w2, b2, *, eps=1e-5, ew_dtype=None):
    """PreNorm(LayerNorm(dim)) followed by FeedForward.  x: (B, S, D) -> (B, S, D)."""
    B, S, D = x.shape
    H = w1.shape[-1]
    M = B * S

    gen = _tpu_generation()
    if ew_dtype is None:
        ew_dtype = default_ew_dtype(gen)
    vmem_budget, vmem_limit = _vmem_budget_and_limit(gen)
    mxu_base = 128 if (gen is not None and gen <= 5) else 256

    x2 = x.reshape(M, D)                               # native dtype; f32 math in-kernel
    gamma2 = gamma.reshape(1, D).astype(jnp.float32)
    beta2 = beta.reshape(1, D).astype(jnp.float32)
    w1_b = w1 if w1.dtype == jnp.bfloat16 else w1.astype(jnp.bfloat16)
    b1_2 = b1.reshape(1, H).astype(jnp.float32)
    w2_b = w2 if w2.dtype == jnp.bfloat16 else w2.astype(jnp.bfloat16)
    b2_2 = b2.reshape(1, D).astype(jnp.float32)

    x_isz = x2.dtype.itemsize
    ew_isz = jnp.dtype(ew_dtype).itemsize

    # Candidate configs, best first.  Later entries drop optional features
    # (single-buffered weights, lane-dense folding) if the runtime rejects them.
    lane_dense_ok = (D < 128) and ((M * D) % 128 == 0)
    configs = []
    for ld in ([True, False] if lane_dense_ok else [False]):
        for wbuf in (1, None):
            configs.append((ld, wbuf))

    last_err = None
    for lane_dense, weight_buffers in configs:
        wbuf_count = 1 if weight_buffers == 1 else 2
        w_bytes = _weight_vmem_bytes(D, H, wbuf_count)
        row_bytes = max(1, _per_row_vmem_bytes(D, H, x_isz, ew_isz, lane_dense))
        max_rows = max(8, (vmem_budget - w_bytes) // row_bytes)

        if lane_dense:
            gran_min = 1024 // math.gcd(D, 1024)        # tm*D % 1024 == 0 -> TR % 8 == 0
            gran_pref = max(gran_min, _round_up(mxu_base, gran_min))
            tm = _pick_rows(M, gran_min, gran_pref, max_rows, gen)
            if tm >= M:
                tm = M                                   # single full block (always legal)
        else:
            tm = _pick_rows(M, 8, mxu_base, max_rows, gen)

        try:
            out = _run_pallas(x2, gamma2, beta2, w1_b, b1_2, w2_b, b2_2,
                              M=M, D=D, H=H, tm=tm, lane_dense=lane_dense,
                              weight_buffers=weight_buffers, ew_dtype=ew_dtype,
                              eps=eps, vmem_limit=vmem_limit)
            return out.reshape(B, S, D)
        except Exception as e:          # unsupported feature on this jax/TPU -> safer config
            last_err = e
    raise last_err


# ----------------------------------------------------------------------------- references
def reference_f32(x, gamma, beta, w1, b1, w2, b2, eps=1e-5):
    mu = jnp.mean(x, axis=-1, keepdims=True)
    var = jnp.mean((x - mu) ** 2, axis=-1, keepdims=True)
    xn = (x - mu) * jax.lax.rsqrt(var + eps) * gamma + beta
    h = xn @ w1 + b1
    h = jnp.where(h >= 0, h, 0.2 * h)
    return h @ w2 + b2


def reference_bf16_matched(x, gamma, beta, w1, b1, w2, b2, eps=1e-5, ew_dtype=jnp.float32):
    mu = jnp.mean(x, axis=-1, keepdims=True)
    var = jnp.mean((x - mu) ** 2, axis=-1, keepdims=True)
    xn = (x - mu) * jax.lax.rsqrt(var + eps) * gamma + beta
    h = jnp.dot(xn.astype(jnp.bfloat16), w1.astype(jnp.bfloat16),
                preferred_element_type=jnp.float32)
    h = h.astype(ew_dtype) + b1.astype(ew_dtype)
    h = jnp.maximum(h, 0.2 * h)
    return jnp.dot(h.astype(jnp.bfloat16), w2.astype(jnp.bfloat16),
                   preferred_element_type=jnp.float32) + b2


# ----------------------------------------------------------------------------- main
if __name__ == "__main__":
    dim = 32
    mlp_ratio = 4
    hidden = dim * mlp_ratio
    B, S = 2, 8

    key = jax.random.PRNGKey(0)
    kx, kg, kbeta, kw1, kb1, kw2, kb2 = jax.random.split(key, 7)

    x = jax.random.normal(kx, (B, S, dim), dtype=jnp.float32)

    # LayerNorm affine params (perturbed from ones/zeros init to exercise the path).
    gamma = 1.0 + 0.1 * jax.random.normal(kg, (dim,), dtype=jnp.float32)
    beta = 0.1 * jax.random.normal(kbeta, (dim,), dtype=jnp.float32)

    # PyTorch-Linear-style init: U(-1/sqrt(fan_in), 1/sqrt(fan_in)).
    bound1 = 1.0 / (dim ** 0.5)
    w1 = jax.random.uniform(kw1, (dim, hidden), jnp.float32, -bound1, bound1)
    b1 = jax.random.uniform(kb1, (hidden,), jnp.float32, -bound1, bound1)
    bound2 = 1.0 / (hidden ** 0.5)
    w2 = jax.random.uniform(kw2, (hidden, dim), jnp.float32, -bound2, bound2)
    b2 = jax.random.uniform(kb2, (dim,), jnp.float32, -bound2, bound2)

    # Pre-cast the FFN weights to bf16 once (outside the per-call wrapper).
    w1_b = w1.astype(jnp.bfloat16)
    w2_b = w2.astype(jnp.bfloat16)

    ew_dtype = default_ew_dtype()

    y = prenorm_feedforward(x, gamma, beta, w1_b, b1, w2_b, b2, ew_dtype=ew_dtype)
    y = jax.block_until_ready(y)
    assert y.shape == (B, S, dim)

    # Tight check against a reference with identical bf16-at-the-dot / element-wise dtype.
    y_bf = reference_bf16_matched(x, gamma, beta, w1, b1, w2, b2, ew_dtype=ew_dtype)
    assert jnp.allclose(y, y_bf, atol=1e-3, rtol=1e-3), "mismatch vs bf16-matched ref"

    # Loose sanity check against the pure-f32 PyTorch-equivalent math.
    y_f32 = reference_f32(x, gamma, beta, w1, b1, w2, b2)
    assert jnp.allclose(y, y_f32, atol=5e-2, rtol=5e-2), "mismatch vs f32 reference"

    print("KERNEL_OK")
</pallas_src>

<mosaic_0001>
module attributes {stable_mosaic.version = 11 : i64} {
  func.func @_prenorm_ffn_kernel(%arg0: i32, %arg1: memref<4x128xf32, #tpu.memory_space<vmem>>, %arg2: memref<1x32xf32, #tpu.memory_space<vmem>>, %arg3: memref<1x32xf32, #tpu.memory_space<vmem>>, %arg4: memref<32x128xbf16, #tpu.memory_space<vmem>>, %arg5: memref<1x128xf32, #tpu.memory_space<vmem>>, %arg6: memref<128x32xbf16, #tpu.memory_space<vmem>>, %arg7: memref<1x32xf32, #tpu.memory_space<vmem>>, %arg8: memref<4x128xf32, #tpu.memory_space<vmem>>) attributes {dimension_semantics = [#tpu.dimension_semantics<parallel>], iteration_bounds = array<i64: 1>, scalar_prefetch = 0 : i64, scratch_operands = 0 : i64, tpu.core_type = #tpu.core_type<tc>, window_params = [{transform_indices = @transform_0, window_bounds = array<i64: 4, 128>}, {pipeline_mode = #tpu.pipeline_mode<synchronous>, transform_indices = @transform_1, window_bounds = array<i64: 1, 32>}, {pipeline_mode = #tpu.pipeline_mode<synchronous>, transform_indices = @transform_2, window_bounds = array<i64: 1, 32>}, {pipeline_mode = #tpu.pipeline_mode<synchronous>, transform_indices = @transform_3, window_bounds = array<i64: 32, 128>}, {pipeline_mode = #tpu.pipeline_mode<synchronous>, transform_indices = @transform_4, window_bounds = array<i64: 1, 128>}, {pipeline_mode = #tpu.pipeline_mode<synchronous>, transform_indices = @transform_5, window_bounds = array<i64: 128, 32>}, {pipeline_mode = #tpu.pipeline_mode<synchronous>, transform_indices = @transform_6, window_bounds = array<i64: 1, 32>}, {transform_indices = @transform_7, window_bounds = array<i64: 4, 128>}]} {
    %c0 = arith.constant 0 : index
    %c0_0 = arith.constant 0 : index
    %0 = vector.load %arg1[%c0, %c0_0] : memref<4x128xf32, #tpu.memory_space<vmem>>, vector<4x128xf32>
    %1 = vector.shape_cast %0 : vector<4x128xf32> to vector<16x32xf32>
    %cst = arith.constant dense<0.000000e+00> : vector<16xf32>
    %2 = vector.multi_reduction <add>, %1, %cst [1] : vector<16x32xf32> to vector<16xf32>
    %3 = vector.shape_cast %2 : vector<16xf32> to vector<16x1xf32>
    %cst_1 = arith.constant 3.200000e+01 : f32
    %4 = vector.broadcast %cst_1 : f32 to vector<16x1xf32>
    %5 = arith.divf %3, %4 : vector<16x1xf32>
    %6 = vector.broadcast %5 : vector<16x1xf32> to vector<16x32xf32>
    %7 = arith.subf %1, %6 : vector<16x32xf32>
    %8 = arith.mulf %7, %7 : vector<16x32xf32>
    %cst_2 = arith.constant dense<0.000000e+00> : vector<16xf32>
    %9 = vector.multi_reduction <add>, %8, %cst_2 [1] : vector<16x32xf32> to vector<16xf32>
    %10 = vector.shape_cast %9 : vector<16xf32> to vector<16x1xf32>
    %cst_3 = arith.constant 3.200000e+01 : f32
    %11 = vector.broadcast %cst_3 : f32 to vector<16x1xf32>
    %12 = arith.divf %10, %11 : vector<16x1xf32>
    %cst_4 = arith.constant 9.99999974E-6 : f32
    %13 = vector.broadcast %cst_4 : f32 to vector<16x1xf32>
    %14 = arith.addf %12, %13 : vector<16x1xf32>
    %15 = math.rsqrt %14 : vector<16x1xf32>
    %16 = vector.broadcast %15 : vector<16x1xf32> to vector<16x32xf32>
    %17 = arith.mulf %7, %16 : vector<16x32xf32>
    %c0_5 = arith.constant 0 : index
    %c0_6 = arith.constant 0 : index
    %18 = vector.load %arg2[%c0_5, %c0_6] : memref<1x32xf32, #tpu.memory_space<vmem>>, vector<1x32xf32>
    %19 = vector.broadcast %18 : vector<1x32xf32> to vector<16x32xf32>
    %20 = arith.mulf %17, %19 : vector<16x32xf32>
    %c0_7 = arith.constant 0 : index
    %c0_8 = arith.constant 0 : index
    %21 = vector.load %arg3[%c0_7, %c0_8] : memref<1x32xf32, #tpu.memory_space<vmem>>, vector<1x32xf32>
    %22 = vector.broadcast %21 : vector<1x32xf32> to vector<16x32xf32>
    %23 = arith.addf %20, %22 : vector<16x32xf32>
    %24 = arith.truncf %23 : vector<16x32xf32> to vector<16x32xbf16>
    %c0_9 = arith.constant 0 : index
    %c0_10 = arith.constant 0 : index
    %25 = vector.load %arg4[%c0_9, %c0_10] : memref<32x128xbf16, #tpu.memory_space<vmem>>, vector<32x128xbf16>
    %cst_11 = arith.constant dense<0.000000e+00> : vector<16x128xf32>
    %26 = tpu.matmul %24, %25, %cst_11 {dimension_numbers = #tpu.dot_dimension_numbers<[1], [0], [0], [1], [0, 0, 1, 1], [], []>} : vector<16x32xbf16>, vector<32x128xbf16>, vector<16x128xf32> -> vector<16x128xf32>
    %c0_12 = arith.constant 0 : index
    %c0_13 = arith.constant 0 : index
    %27 = vector.load %arg5[%c0_12, %c0_13] : memref<1x128xf32, #tpu.memory_space<vmem>>, vector<1x128xf32>
    %28 = vector.broadcast %27 : vector<1x128xf32> to vector<16x128xf32>
    %29 = arith.addf %26, %28 : vector<16x128xf32>
    %cst_14 = arith.constant 2.000000e-01 : f32
    %30 = vector.broadcast %cst_14 : f32 to vector<16x128xf32>
    %31 = arith.mulf %30, %29 : vector<16x128xf32>
    %32 = arith.maximumf %29, %31 : vector<16x128xf32>
    %33 = arith.truncf %32 : vector<16x128xf32> to vector<16x128xbf16>
    %c0_15 = arith.constant 0 : index
    %c0_16 = arith.constant 0 : index
    %34 = vector.load %arg6[%c0_15, %c0_16] : memref<128x32xbf16, #tpu.memory_space<vmem>>, vector<128x32xbf16>
    %cst_17 = arith.constant dense<0.000000e+00> : vector<16x32xf32>
    %35 = tpu.matmul %33, %34, %cst_17 {dimension_numbers = #tpu.dot_dimension_numbers<[1], [0], [0], [1], [0, 0, 1, 1], [], []>} : vector<16x128xbf16>, vector<128x32xbf16>, vector<16x32xf32> -> vector<16x32xf32>
    %c0_18 = arith.constant 0 : index
    %c0_19 = arith.constant 0 : index
    %36 = vector.load %arg7[%c0_18, %c0_19] : memref<1x32xf32, #tpu.memory_space<vmem>>, vector<1x32xf32>
    %37 = vector.broadcast %36 : vector<1x32xf32> to vector<16x32xf32>
    %38 = arith.addf %35, %37 : vector<16x32xf32>
    %39 = vector.shape_cast %38 : vector<16x32xf32> to vector<4x128xf32>
    %c0_20 = arith.constant 0 : index
    %c0_21 = arith.constant 0 : index
    %40 = vector.load %arg8[%c0_20, %c0_21] : memref<4x128xf32, #tpu.memory_space<vmem>>, vector<4x128xf32>
    tpu.vector_store %arg8[%c0_20, %c0_21], %39 {strides = array<i32>} : memref<4x128xf32, #tpu.memory_space<vmem>>, vector<4x128xf32>,
    return
  }
  func.func @transform_0(%arg0: i32) -> (i32, i32) {
    %c0_i32 = arith.constant 0 : i32
    %c0_i32_0 = arith.constant 0 : i32
    return %arg0, %c0_i32 : i32, i32
  }
  func.func @transform_1(%arg0: i32) -> (i32, i32) {
    %c0_i32 = arith.constant 0 : i32
    %c0_i32_0 = arith.constant 0 : i32
    %c0_i32_1 = arith.constant 0 : i32
    return %c0_i32, %c0_i32_0 : i32, i32
  }
  func.func @transform_2(%arg0: i32) -> (i32, i32) {
    %c0_i32 = arith.constant 0 : i32
    %c0_i32_0 = arith.constant 0 : i32
    %c0_i32_1 = arith.constant 0 : i32
    return %c0_i32, %c0_i32_0 : i32, i32
  }
  func.func @transform_3(%arg0: i32) -> (i32, i32) {
    %c0_i32 = arith.constant 0 : i32
    %c0_i32_0 = arith.constant 0 : i32
    %c0_i32_1 = arith.constant 0 : i32
    return %c0_i32, %c0_i32_0 : i32, i32
  }
  func.func @transform_4(%arg0: i32) -> (i32, i32) {
    %c0_i32 = arith.constant 0 : i32
    %c0_i32_0 = arith.constant 0 : i32
    %c0_i32_1 = arith.constant 0 : i32
    return %c0_i32, %c0_i32_0 : i32, i32
  }
  func.func @transform_5(%arg0: i32) -> (i32, i32) {
    %c0_i32 = arith.constant 0 : i32
    %c0_i32_0 = arith.constant 0 : i32
    %c0_i32_1 = arith.constant 0 : i32
    return %c0_i32, %c0_i32_0 : i32, i32
  }
  func.func @transform_6(%arg0: i32) -> (i32, i32) {
    %c0_i32 = arith.constant 0 : i32
    %c0_i32_0 = arith.constant 0 : i32
    %c0_i32_1 = arith.constant 0 : i32
    return %c0_i32, %c0_i32_0 : i32, i32
  }
  func.func @transform_7(%arg0: i32) -> (i32, i32) {
    %c0_i32 = arith.constant 0 : i32
    %c0_i32_0 = arith.constant 0 : i32
    return %arg0, %c0_i32 : i32, i32
  }
}

module attributes {stable_mosaic.version = 11 : i64} {
  func.func @_prenorm_ffn_kernel(%arg0: i32, %arg1: memref<4x128xf32, #tpu.memory_space<vmem>>, %arg2: memref<1x32xf32, #tpu.memory_space<vmem>>, %arg3: memref<1x32xf32, #tpu.memory_space<vmem>>, %arg4: memref<32x128xbf16, #tpu.memory_space<vmem>>, %arg5: memref<1x128xf32, #tpu.memory_space<vmem>>, %arg6: memref<128x32xbf16, #tpu.memory_space<vmem>>, %arg7: memref<1x32xf32, #tpu.memory_space<vmem>>, %arg8: memref<4x128xf32, #tpu.memory_space<vmem>>) attributes {dimension_semantics = [#tpu.dimension_semantics<parallel>], iteration_bounds = array<i64: 1>, scalar_prefetch = 0 : i64, scratch_operands = 0 : i64, tpu.core_type = #tpu.core_type<tc>, window_params = [{transform_indices = @transform_0, window_bounds = array<i64: 4, 128>}, {pipeline_mode = #tpu.pipeline_mode<synchronous>, transform_indices = @transform_1, window_bounds = array<i64: 1, 32>}, {pipeline_mode = #tpu.pipeline_mode<synchronous>, transform_indices = @transform_2, window_bounds = array<i64: 1, 32>}, {pipeline_mode = #tpu.pipeline_mode<synchronous>, transform_indices = @transform_3, window_bounds = array<i64: 32, 128>}, {pipeline_mode = #tpu.pipeline_mode<synchronous>, transform_indices = @transform_4, window_bounds = array<i64: 1, 128>}, {pipeline_mode = #tpu.pipeline_mode<synchronous>, transform_indices = @transform_5, window_bounds = array<i64: 128, 32>}, {pipeline_mode = #tpu.pipeline_mode<synchronous>, transform_indices = @transform_6, window_bounds = array<i64: 1, 32>}, {transform_indices = @transform_7, window_bounds = array<i64: 4, 128>}]} {
    %c0 = arith.constant 0 : index
    %c0_0 = arith.constant 0 : index
    %0 = vector.load %arg1[%c0, %c0_0] : memref<4x128xf32, #tpu.memory_space<vmem>>, vector<4x128xf32>
    %1 = vector.shape_cast %0 : vector<4x128xf32> to vector<16x32xf32>
    %cst = arith.constant dense<0.000000e+00> : vector<16xf32>
    %2 = vector.multi_reduction <add>, %1, %cst [1] : vector<16x32xf32> to vector<16xf32>
    %3 = vector.shape_cast %2 : vector<16xf32> to vector<16x1xf32>
    %cst_1 = arith.constant 3.200000e+01 : f32
    %4 = vector.broadcast %cst_1 : f32 to vector<16x1xf32>
    %5 = arith.divf %3, %4 : vector<16x1xf32>
    %6 = vector.broadcast %5 : vector<16x1xf32> to vector<16x32xf32>
    %7 = arith.subf %1, %6 : vector<16x32xf32>
    %8 = arith.mulf %7, %7 : vector<16x32xf32>
    %cst_2 = arith.constant dense<0.000000e+00> : vector<16xf32>
    %9 = vector.multi_reduction <add>, %8, %cst_2 [1] : vector<16x32xf32> to vector<16xf32>
    %10 = vector.shape_cast %9 : vector<16xf32> to vector<16x1xf32>
    %cst_3 = arith.constant 3.200000e+01 : f32
    %11 = vector.broadcast %cst_3 : f32 to vector<16x1xf32>
    %12 = arith.divf %10, %11 : vector<16x1xf32>
    %cst_4 = arith.constant 9.99999974E-6 : f32
    %13 = vector.broadcast %cst_4 : f32 to vector<16x1xf32>
    %14 = arith.addf %12, %13 : vector<16x1xf32>
    %15 = math.rsqrt %14 : vector<16x1xf32>
    %16 = vector.broadcast %15 : vector<16x1xf32> to vector<16x32xf32>
    %17 = arith.mulf %7, %16 : vector<16x32xf32>
    %c0_5 = arith.constant 0 : index
    %c0_6 = arith.constant 0 : index
    %18 = vector.load %arg2[%c0_5, %c0_6] : memref<1x32xf32, #tpu.memory_space<vmem>>, vector<1x32xf32>
    %19 = vector.broadcast %18 : vector<1x32xf32> to vector<16x32xf32>
    %20 = arith.mulf %17, %19 : vector<16x32xf32>
    %c0_7 = arith.constant 0 : index
    %c0_8 = arith.constant 0 : index
    %21 = vector.load %arg3[%c0_7, %c0_8] : memref<1x32xf32, #tpu.memory_space<vmem>>, vector<1x32xf32>
    %22 = vector.broadcast %21 : vector<1x32xf32> to vector<16x32xf32>
    %23 = arith.addf %20, %22 : vector<16x32xf32>
    %24 = arith.truncf %23 : vector<16x32xf32> to vector<16x32xbf16>
    %c0_9 = arith.constant 0 : index
    %c0_10 = arith.constant 0 : index
    %25 = vector.load %arg4[%c0_9, %c0_10] : memref<32x128xbf16, #tpu.memory_space<vmem>>, vector<32x128xbf16>
    %cst_11 = arith.constant dense<0.000000e+00> : vector<16x128xf32>
    %26 = tpu.matmul %24, %25, %cst_11 {dimension_numbers = #tpu.dot_dimension_numbers<[1], [0], [0], [1], [0, 0, 1, 1], [], []>} : vector<16x32xbf16>, vector<32x128xbf16>, vector<16x128xf32> -> vector<16x128xf32>
    %c0_12 = arith.constant 0 : index
    %c0_13 = arith.constant 0 : index
    %27 = vector.load %arg5[%c0_12, %c0_13] : memref<1x128xf32, #tpu.memory_space<vmem>>, vector<1x128xf32>
    %28 = vector.broadcast %27 : vector<1x128xf32> to vector<16x128xf32>
    %29 = arith.addf %26, %28 : vector<16x128xf32>
    %cst_14 = arith.constant 2.000000e-01 : f32
    %30 = vector.broadcast %cst_14 : f32 to vector<16x128xf32>
    %31 = arith.mulf %30, %29 : vector<16x128xf32>
    %32 = arith.maximumf %29, %31 : vector<16x128xf32>
    %33 = arith.truncf %32 : vector<16x128xf32> to vector<16x128xbf16>
    %c0_15 = arith.constant 0 : index
    %c0_16 = arith.constant 0 : index
    %34 = vector.load %arg6[%c0_15, %c0_16] : memref<128x32xbf16, #tpu.memory_space<vmem>>, vector<128x32xbf16>
    %cst_17 = arith.constant dense<0.000000e+00> : vector<16x32xf32>
    %35 = tpu.matmul %33, %34, %cst_17 {dimension_numbers = #tpu.dot_dimension_numbers<[1], [0], [0], [1], [0, 0, 1, 1], [], []>} : vector<16x128xbf16>, vector<128x32xbf16>, vector<16x32xf32> -> vector<16x32xf32>
    %c0_18 = arith.constant 0 : index
    %c0_19 = arith.constant 0 : index
    %36 = vector.load %arg7[%c0_18, %c0_19] : memref<1x32xf32, #tpu.memory_space<vmem>>, vector<1x32xf32>
    %37 = vector.broadcast %36 : vector<1x32xf32> to vector<16x32xf32>
    %38 = arith.addf %35, %37 : vector<16x32xf32>
    %39 = vector.shape_cast %38 : vector<16x32xf32> to vector<4x128xf32>
    %c0_20 = arith.constant 0 : index
    %c0_21 = arith.constant 0 : index
    %40 = vector.load %arg8[%c0_20, %c0_21] : memref<4x128xf32, #tpu.memory_space<vmem>>, vector<4x128xf32>
    tpu.vector_store %arg8[%c0_20, %c0_21], %39 {strides = array<i32>} : memref<4x128xf32, #tpu.memory_space<vmem>>, vector<4x128xf32>,
    return
  }
  func.func @transform_0(%arg0: i32) -> (i32, i32) {
    %c0_i32 = arith.constant 0 : i32
    %c0_i32_0 = arith.constant 0 : i32
    return %arg0, %c0_i32 : i32, i32
  }
  func.func @transform_1(%arg0: i32) -> (i32, i32) {
    %c0_i32 = arith.constant 0 : i32
    %c0_i32_0 = arith.constant 0 : i32
    %c0_i32_1 = arith.constant 0 : i32
    return %c0_i32, %c0_i32_0 : i32, i32
  }
  func.func @transform_2(%arg0: i32) -> (i32, i32) {
    %c0_i32 = arith.constant 0 : i32
    %c0_i32_0 = arith.constant 0 : i32
    %c0_i32_1 = arith.constant 0 : i32
    return %c0_i32, %c0_i32_0 : i32, i32
  }
  func.func @transform_3(%arg0: i32) -> (i32, i32) {
    %c0_i32 = arith.constant 0 : i32
    %c0_i32_0 = arith.constant 0 : i32
    %c0_i32_1 = arith.constant 0 : i32
    return %c0_i32, %c0_i32_0 : i32, i32
  }
  func.func @transform_4(%arg0: i32) -> (i32, i32) {
    %c0_i32 = arith.constant 0 : i32
    %c0_i32_0 = arith.constant 0 : i32
    %c0_i32_1 = arith.constant 0 : i32
    return %c0_i32, %c0_i32_0 : i32, i32
  }
  func.func @transform_5(%arg0: i32) -> (i32, i32) {
    %c0_i32 = arith.constant 0 : i32
    %c0_i32_0 = arith.constant 0 : i32
    %c0_i32_1 = arith.constant 0 : i32
    return %c0_i32, %c0_i32_0 : i32, i32
  }
  func.func @transform_6(%arg0: i32) -> (i32, i32) {
    %c0_i32 = arith.constant 0 : i32
    %c0_i32_0 = arith.constant 0 : i32
    %c0_i32_1 = arith.constant 0 : i32
    return %c0_i32, %c0_i32_0 : i32, i32
  }
  func.func @transform_7(%arg0: i32) -> (i32, i32) {
    %c0_i32 = arith.constant 0 : i32
    %c0_i32_0 = arith.constant 0 : i32
    return %arg0, %c0_i32 : i32, i32
  }
}

module attributes {stable_mosaic.version = 11 : i64} {
  func.func @_prenorm_ffn_kernel(%arg0: i32, %arg1: memref<16x32xf32, #tpu.memory_space<vmem>>, %arg2: memref<1x32xf32, #tpu.memory_space<vmem>>, %arg3: memref<1x32xf32, #tpu.memory_space<vmem>>, %arg4: memref<32x128xbf16, #tpu.memory_space<vmem>>, %arg5: memref<1x128xf32, #tpu.memory_space<vmem>>, %arg6: memref<128x32xbf16, #tpu.memory_space<vmem>>, %arg7: memref<1x32xf32, #tpu.memory_space<vmem>>, %arg8: memref<16x32xf32, #tpu.memory_space<vmem>>) attributes {dimension_semantics = [#tpu.dimension_semantics<parallel>], iteration_bounds = array<i64: 1>, scalar_prefetch = 0 : i64, scratch_operands = 0 : i64, tpu.core_type = #tpu.core_type<tc>, window_params = [{transform_indices = @transform_0, window_bounds = array<i64: 16, 32>}, {pipeline_mode = #tpu.pipeline_mode<synchronous>, transform_indices = @transform_1, window_bounds = array<i64: 1, 32>}, {pipeline_mode = #tpu.pipeline_mode<synchronous>, transform_indices = @transform_2, window_bounds = array<i64: 1, 32>}, {pipeline_mode = #tpu.pipeline_mode<synchronous>, transform_indices = @transform_3, window_bounds = array<i64: 32, 128>}, {pipeline_mode = #tpu.pipeline_mode<synchronous>, transform_indices = @transform_4, window_bounds = array<i64: 1, 128>}, {pipeline_mode = #tpu.pipeline_mode<synchronous>, transform_indices = @transform_5, window_bounds = array<i64: 128, 32>}, {pipeline_mode = #tpu.pipeline_mode<synchronous>, transform_indices = @transform_6, window_bounds = array<i64: 1, 32>}, {transform_indices = @transform_7, window_bounds = array<i64: 16, 32>}]} {
    %c0 = arith.constant 0 : index
    %c0_0 = arith.constant 0 : index
    %0 = vector.load %arg1[%c0, %c0_0] : memref<16x32xf32, #tpu.memory_space<vmem>>, vector<16x32xf32>
    %cst = arith.constant dense<0.000000e+00> : vector<16xf32>
    %1 = vector.multi_reduction <add>, %0, %cst [1] : vector<16x32xf32> to vector<16xf32>
    %2 = vector.shape_cast %1 : vector<16xf32> to vector<16x1xf32>
    %cst_1 = arith.constant 3.200000e+01 : f32
    %3 = vector.broadcast %cst_1 : f32 to vector<16x1xf32>
    %4 = arith.divf %2, %3 : vector<16x1xf32>
    %5 = vector.broadcast %4 : vector<16x1xf32> to vector<16x32xf32>
    %6 = arith.subf %0, %5 : vector<16x32xf32>
    %7 = arith.mulf %6, %6 : vector<16x32xf32>
    %cst_2 = arith.constant dense<0.000000e+00> : vector<16xf32>
    %8 = vector.multi_reduction <add>, %7, %cst_2 [1] : vector<16x32xf32> to vector<16xf32>
    %9 = vector.shape_cast %8 : vector<16xf32> to vector<16x1xf32>
    %cst_3 = arith.constant 3.200000e+01 : f32
    %10 = vector.broadcast %cst_3 : f32 to vector<16x1xf32>
    %11 = arith.divf %9, %10 : vector<16x1xf32>
    %cst_4 = arith.constant 9.99999974E-6 : f32
    %12 = vector.broadcast %cst_4 : f32 to vector<16x1xf32>
    %13 = arith.addf %11, %12 : vector<16x1xf32>
    %14 = math.rsqrt %13 : vector<16x1xf32>
    %15 = vector.broadcast %14 : vector<16x1xf32> to vector<16x32xf32>
    %16 = arith.mulf %6, %15 : vector<16x32xf32>
    %c0_5 = arith.constant 0 : index
    %c0_6 = arith.constant 0 : index
    %17 = vector.load %arg2[%c0_5, %c0_6] : memref<1x32xf32, #tpu.memory_space<vmem>>, vector<1x32xf32>
    %18 = vector.broadcast %17 : vector<1x32xf32> to vector<16x32xf32>
    %19 = arith.mulf %16, %18 : vector<16x32xf32>
    %c0_7 = arith.constant 0 : index
    %c0_8 = arith.constant 0 : index
    %20 = vector.load %arg3[%c0_7, %c0_8] : memref<1x32xf32, #tpu.memory_space<vmem>>, vector<1x32xf32>
    %21 = vector.broadcast %20 : vector<1x32xf32> to vector<16x32xf32>
    %22 = arith.addf %19, %21 : vector<16x32xf32>
    %23 = arith.truncf %22 : vector<16x32xf32> to vector<16x32xbf16>
    %c0_9 = arith.constant 0 : index
    %c0_10 = arith.constant 0 : index
    %24 = vector.load %arg4[%c0_9, %c0_10] : memref<32x128xbf16, #tpu.memory_space<vmem>>, vector<32x128xbf16>
    %cst_11 = arith.constant dense<0.000000e+00> : vector<16x128xf32>
    %25 = tpu.matmul %23, %24, %cst_11 {dimension_numbers = #tpu.dot_dimension_numbers<[1], [0], [0], [1], [0, 0, 1, 1], [], []>} : vector<16x32xbf16>, vector<32x128xbf16>, vector<16x128xf32> -> vector<16x128xf32>
    %c0_12 = arith.constant 0 : index
    %c0_13 = arith.constant 0 : index
    %26 = vector.load %arg5[%c0_12, %c0_13] : memref<1x128xf32, #tpu.memory_space<vmem>>, vector<1x128xf32>
    %27 = vector.broadcast %26 : vector<1x128xf32> to vector<16x128xf32>
    %28 = arith.addf %25, %27 : vector<16x128xf32>
    %cst_14 = arith.constant 2.000000e-01 : f32
    %29 = vector.broadcast %cst_14 : f32 to vector<16x128xf32>
    %30 = arith.mulf %29, %28 : vector<16x128xf32>
    %31 = arith.maximumf %28, %30 : vector<16x128xf32>
    %32 = arith.truncf %31 : vector<16x128xf32> to vector<16x128xbf16>
    %c0_15 = arith.constant 0 : index
    %c0_16 = arith.constant 0 : index
    %33 = vector.load %arg6[%c0_15, %c0_16] : memref<128x32xbf16, #tpu.memory_space<vmem>>, vector<128x32xbf16>
    %cst_17 = arith.constant dense<0.000000e+00> : vector<16x32xf32>
    %34 = tpu.matmul %32, %33, %cst_17 {dimension_numbers = #tpu.dot_dimension_numbers<[1], [0], [0], [1], [0, 0, 1, 1], [], []>} : vector<16x128xbf16>, vector<128x32xbf16>, vector<16x32xf32> -> vector<16x32xf32>
    %c0_18 = arith.constant 0 : index
    %c0_19 = arith.constant 0 : index
    %35 = vector.load %arg7[%c0_18, %c0_19] : memref<1x32xf32, #tpu.memory_space<vmem>>, vector<1x32xf32>
    %36 = vector.broadcast %35 : vector<1x32xf32> to vector<16x32xf32>
    %37 = arith.addf %34, %36 : vector<16x32xf32>
    %c0_20 = arith.constant 0 : index
    %c0_21 = arith.constant 0 : index
    %38 = vector.load %arg8[%c0_20, %c0_21] : memref<16x32xf32, #tpu.memory_space<vmem>>, vector<16x32xf32>
    tpu.vector_store %arg8[%c0_20, %c0_21], %37 {strides = array<i32>} : memref<16x32xf32, #tpu.memory_space<vmem>>, vector<16x32xf32>,
    return
  }
  func.func @transform_0(%arg0: i32) -> (i32, i32) {
    %c0_i32 = arith.constant 0 : i32
    %c0_i32_0 = arith.constant 0 : i32
    return %arg0, %c0_i32 : i32, i32
  }
  func.func @transform_1(%arg0: i32) -> (i32, i32) {
    %c0_i32 = arith.constant 0 : i32
    %c0_i32_0 = arith.constant 0 : i32
    %c0_i32_1 = arith.constant 0 : i32
    return %c0_i32, %c0_i32_0 : i32, i32
  }
  func.func @transform_2(%arg0: i32) -> (i32, i32) {
    %c0_i32 = arith.constant 0 : i32
    %c0_i32_0 = arith.constant 0 : i32
    %c0_i32_1 = arith.constant 0 : i32
    return %c0_i32, %c0_i32_0 : i32, i32
  }
  func.func @transform_3(%arg0: i32) -> (i32, i32) {
    %c0_i32 = arith.constant 0 : i32
    %c0_i32_0 = arith.constant 0 : i32
    %c0_i32_1 = arith.constant 0 : i32
    return %c0_i32, %c0_i32_0 : i32, i32
  }
  func.func @transform_4(%arg0: i32) -> (i32, i32) {
    %c0_i32 = arith.constant 0 : i32
    %c0_i32_0 = arith.constant 0 : i32
    %c0_i32_1 = arith.constant 0 : i32
    return %c0_i32, %c0_i32_0 : i32, i32
  }
  func.func @transform_5(%arg0: i32) -> (i32, i32) {
    %c0_i32 = arith.constant 0 : i32
    %c0_i32_0 = arith.constant 0 : i32
    %c0_i32_1 = arith.constant 0 : i32
    return %c0_i32, %c0_i32_0 : i32, i32
  }
  func.func @transform_6(%arg0: i32) -> (i32, i32) {
    %c0_i32 = arith.constant 0 : i32
    %c0_i32_0 = arith.constant 0 : i32
    %c0_i32_1 = arith.constant 0 : i32
    return %c0_i32, %c0_i32_0 : i32, i32
  }
  func.func @transform_7(%arg0: i32) -> (i32, i32) {
    %c0_i32 = arith.constant 0 : i32
    %c0_i32_0 = arith.constant 0 : i32
    return %arg0, %c0_i32 : i32, i32
  }
}

module attributes {stable_mosaic.version = 11 : i64} {
  func.func @_prenorm_ffn_kernel(%arg0: i32, %arg1: memref<16x32xf32, #tpu.memory_space<vmem>>, %arg2: memref<1x32xf32, #tpu.memory_space<vmem>>, %arg3: memref<1x32xf32, #tpu.memory_space<vmem>>, %arg4: memref<32x128xbf16, #tpu.memory_space<vmem>>, %arg5: memref<1x128xf32, #tpu.memory_space<vmem>>, %arg6: memref<128x32xbf16, #tpu.memory_space<vmem>>, %arg7: memref<1x32xf32, #tpu.memory_space<vmem>>, %arg8: memref<16x32xf32, #tpu.memory_space<vmem>>) attributes {dimension_semantics = [#tpu.dimension_semantics<parallel>], iteration_bounds = array<i64: 1>, scalar_prefetch = 0 : i64, scratch_operands = 0 : i64, tpu.core_type = #tpu.core_type<tc>, window_params = [{transform_indices = @transform_0, window_bounds = array<i64: 16, 32>}, {pipeline_mode = #tpu.pipeline_mode<synchronous>, transform_indices = @transform_1, window_bounds = array<i64: 1, 32>}, {pipeline_mode = #tpu.pipeline_mode<synchronous>, transform_indices = @transform_2, window_bounds = array<i64: 1, 32>}, {pipeline_mode = #tpu.pipeline_mode<synchronous>, transform_indices = @transform_3, window_bounds = array<i64: 32, 128>}, {pipeline_mode = #tpu.pipeline_mode<synchronous>, transform_indices = @transform_4, window_bounds = array<i64: 1, 128>}, {pipeline_mode = #tpu.pipeline_mode<synchronous>, transform_indices = @transform_5, window_bounds = array<i64: 128, 32>}, {pipeline_mode = #tpu.pipeline_mode<synchronous>, transform_indices = @transform_6, window_bounds = array<i64: 1, 32>}, {transform_indices = @transform_7, window_bounds = array<i64: 16, 32>}]} {
    %c0 = arith.constant 0 : index
    %c0_0 = arith.constant 0 : index
    %0 = vector.load %arg1[%c0, %c0_0] : memref<16x32xf32, #tpu.memory_space<vmem>>, vector<16x32xf32>
    %cst = arith.constant dense<0.000000e+00> : vector<16xf32>
    %1 = vector.multi_reduction <add>, %0, %cst [1] : vector<16x32xf32> to vector<16xf32>
    %2 = vector.shape_cast %1 : vector<16xf32> to vector<16x1xf32>
    %cst_1 = arith.constant 3.200000e+01 : f32
    %3 = vector.broadcast %cst_1 : f32 to vector<16x1xf32>
    %4 = arith.divf %2, %3 : vector<16x1xf32>
    %5 = vector.broadcast %4 : vector<16x1xf32> to vector<16x32xf32>
    %6 = arith.subf %0, %5 : vector<16x32xf32>
    %7 = arith.mulf %6, %6 : vector<16x32xf32>
    %cst_2 = arith.constant dense<0.000000e+00> : vector<16xf32>
    %8 = vector.multi_reduction <add>, %7, %cst_2 [1] : vector<16x32xf32> to vector<16xf32>
    %9 = vector.shape_cast %8 : vector<16xf32> to vector<16x1xf32>
    %cst_3 = arith.constant 3.200000e+01 : f32
    %10 = vector.broadcast %cst_3 : f32 to vector<16x1xf32>
    %11 = arith.divf %9, %10 : vector<16x1xf32>
    %cst_4 = arith.constant 9.99999974E-6 : f32
    %12 = vector.broadcast %cst_4 : f32 to vector<16x1xf32>
    %13 = arith.addf %11, %12 : vector<16x1xf32>
    %14 = math.rsqrt %13 : vector<16x1xf32>
    %15 = vector.broadcast %14 : vector<16x1xf32> to vector<16x32xf32>
    %16 = arith.mulf %6, %15 : vector<16x32xf32>
    %c0_5 = arith.constant 0 : index
    %c0_6 = arith.constant 0 : index
    %17 = vector.load %arg2[%c0_5, %c0_6] : memref<1x32xf32, #tpu.memory_space<vmem>>, vector<1x32xf32>
    %18 = vector.broadcast %17 : vector<1x32xf32> to vector<16x32xf32>
    %19 = arith.mulf %16, %18 : vector<16x32xf32>
    %c0_7 = arith.constant 0 : index
    %c0_8 = arith.constant 0 : index
    %20 = vector.load %arg3[%c0_7, %c0_8] : memref<1x32xf32, #tpu.memory_space<vmem>>, vector<1x32xf32>
    %21 = vector.broadcast %20 : vector<1x32xf32> to vector<16x32xf32>
    %22 = arith.addf %19, %21 : vector<16x32xf32>
    %23 = arith.truncf %22 : vector<16x32xf32> to vector<16x32xbf16>
    %c0_9 = arith.constant 0 : index
    %c0_10 = arith.constant 0 : index
    %24 = vector.load %arg4[%c0_9, %c0_10] : memref<32x128xbf16, #tpu.memory_space<vmem>>, vector<32x128xbf16>
    %cst_11 = arith.constant dense<0.000000e+00> : vector<16x128xf32>
    %25 = tpu.matmul %23, %24, %cst_11 {dimension_numbers = #tpu.dot_dimension_numbers<[1], [0], [0], [1], [0, 0, 1, 1], [], []>} : vector<16x32xbf16>, vector<32x128xbf16>, vector<16x128xf32> -> vector<16x128xf32>
    %c0_12 = arith.constant 0 : index
    %c0_13 = arith.constant 0 : index
    %26 = vector.load %arg5[%c0_12, %c0_13] : memref<1x128xf32, #tpu.memory_space<vmem>>, vector<1x128xf32>
    %27 = vector.broadcast %26 : vector<1x128xf32> to vector<16x128xf32>
    %28 = arith.addf %25, %27 : vector<16x128xf32>
    %cst_14 = arith.constant 2.000000e-01 : f32
    %29 = vector.broadcast %cst_14 : f32 to vector<16x128xf32>
    %30 = arith.mulf %29, %28 : vector<16x128xf32>
    %31 = arith.maximumf %28, %30 : vector<16x128xf32>
    %32 = arith.truncf %31 : vector<16x128xf32> to vector<16x128xbf16>
    %c0_15 = arith.constant 0 : index
    %c0_16 = arith.constant 0 : index
    %33 = vector.load %arg6[%c0_15, %c0_16] : memref<128x32xbf16, #tpu.memory_space<vmem>>, vector<128x32xbf16>
    %cst_17 = arith.constant dense<0.000000e+00> : vector<16x32xf32>
    %34 = tpu.matmul %32, %33, %cst_17 {dimension_numbers = #tpu.dot_dimension_numbers<[1], [0], [0], [1], [0, 0, 1, 1], [], []>} : vector<16x128xbf16>, vector<128x32xbf16>, vector<16x32xf32> -> vector<16x32xf32>
    %c0_18 = arith.constant 0 : index
    %c0_19 = arith.constant 0 : index
    %35 = vector.load %arg7[%c0_18, %c0_19] : memref<1x32xf32, #tpu.memory_space<vmem>>, vector<1x32xf32>
    %36 = vector.broadcast %35 : vector<1x32xf32> to vector<16x32xf32>
    %37 = arith.addf %34, %36 : vector<16x32xf32>
    %c0_20 = arith.constant 0 : index
    %c0_21 = arith.constant 0 : index
    %38 = vector.load %arg8[%c0_20, %c0_21] : memref<16x32xf32, #tpu.memory_space<vmem>>, vector<16x32xf32>
    tpu.vector_store %arg8[%c0_20, %c0_21], %37 {strides = array<i32>} : memref<16x32xf32, #tpu.memory_space<vmem>>, vector<16x32xf32>,
    return
  }
  func.func @transform_0(%arg0: i32) -> (i32, i32) {
    %c0_i32 = arith.constant 0 : i32
    %c0_i32_0 = arith.constant 0 : i32
    return %arg0, %c0_i32 : i32, i32
  }
  func.func @transform_1(%arg0: i32) -> (i32, i32) {
    %c0_i32 = arith.constant 0 : i32
    %c0_i32_0 = arith.constant 0 : i32
    %c0_i32_1 = arith.constant 0 : i32
    return %c0_i32, %c0_i32_0 : i32, i32
  }
  func.func @transform_2(%arg0: i32) -> (i32, i32) {
    %c0_i32 = arith.constant 0 : i32
    %c0_i32_0 = arith.constant 0 : i32
    %c0_i32_1 = arith.constant 0 : i32
    return %c0_i32, %c0_i32_0 : i32, i32
  }
  func.func @transform_3(%arg0: i32) -> (i32, i32) {
    %c0_i32 = arith.constant 0 : i32
    %c0_i32_0 = arith.constant 0 : i32
    %c0_i32_1 = arith.constant 0 : i32
    return %c0_i32, %c0_i32_0 : i32, i32
  }
  func.func @transform_4(%arg0: i32) -> (i32, i32) {
    %c0_i32 = arith.constant 0 : i32
    %c0_i32_0 = arith.constant 0 : i32
    %c0_i32_1 = arith.constant 0 : i32
    return %c0_i32, %c0_i32_0 : i32, i32
  }
  func.func @transform_5(%arg0: i32) -> (i32, i32) {
    %c0_i32 = arith.constant 0 : i32
    %c0_i32_0 = arith.constant 0 : i32
    %c0_i32_1 = arith.constant 0 : i32
    return %c0_i32, %c0_i32_0 : i32, i32
  }
  func.func @transform_6(%arg0: i32) -> (i32, i32) {
    %c0_i32 = arith.constant 0 : i32
    %c0_i32_0 = arith.constant 0 : i32
    %c0_i32_1 = arith.constant 0 : i32
    return %c0_i32, %c0_i32_0 : i32, i32
  }
  func.func @transform_7(%arg0: i32) -> (i32, i32) {
    %c0_i32 = arith.constant 0 : i32
    %c0_i32_0 = arith.constant 0 : i32
    return %arg0, %c0_i32 : i32, i32
  }
}

</mosaic_0001>

<llo_original>
// kernel: tpu_custom_call.1
$region0: #{tpu_custom_call.1}
  #allocation0 [shape = 'u32[]', space=smem, size = 0x4, offset = 0x4, fixed_abs, tag = 'smem constant byte address 0x4 - core index']
  #allocation1 [shape = 'u32[144,128]{1,0:T(1,128)}', space=vmem, size = 0x12000, scoped, tag = 'internal scratch']
  %s0 = inlined_call_operand.vmem [shape: f32[16,32], index: 0, kind: input, shape index: {}]
  %s1 = inlined_call_operand.vmem [shape: f32[1,32], index: 1, kind: input, shape index: {}]
  %s2 = inlined_call_operand.vmem [shape: f32[1,32], index: 2, kind: input, shape index: {}]
  %s3 = inlined_call_operand.vmem [shape: bf16[32,128], index: 3, kind: input, shape index: {}]
  %s4 = inlined_call_operand.vmem [shape: f32[1,128], index: 4, kind: input, shape index: {}]
  %s5 = inlined_call_operand.vmem [shape: bf16[128,32], index: 5, kind: input, shape index: {}]
  %s6 = inlined_call_operand.vmem [shape: f32[1,32], index: 6, kind: input, shape index: {}]
  %s7 = inlined_call_operand.hbm [shape: f32[16,32], index: 7, kind: output, shape index: {}]
  %s8 = sld [smem:[#allocation0]]
  $region38: #{tpu_custom_call.1} parent=0
    _
  %s10 = ssub.s32 1, %s8
  %s11 = scalar_select 0, %s10, %s8
  $region1: #{tpu_custom_call.1} parent=0
    #allocation2 [shape = 'u8[8192]{0}', space=vmem, size = 0x2000, scoped, tag = 'output window, operand 0, single buffered']
    #allocation3 [shape = 's32[1]{0}', space=sflag, size = 0x4, scoped, tag = 'scoped memory for tpu_custom_call.1']
    %12 = vsyncpa [#allocation3], 0
    // Predicated region
    $region2: #{tpu_custom_call.1} parent=1 // pred_check
      _
    $region3: #{tpu_custom_call.1} parent=1 // pred_check_branch
      %14 = sbr.rel (0) target = $region5
    $region4: #{tpu_custom_call.1} parent=1 // pred_region
      _
    $region5: #{tpu_custom_call.1} parent=1 // pred_fallthru
      _
    // Predicated region
    $region6: #{tpu_custom_call.1} parent=1 // pred_check
      _
    $region7: #{tpu_custom_call.1} parent=1 // pred_check_branch
      %16 = sbr.rel (0) target = $region9
    $region8: #{tpu_custom_call.1} parent=1 // pred_region
      _
    $region9: #{tpu_custom_call.1} parent=1 // pred_fallthru
      _
    // Predicated region
    $region10: #{tpu_custom_call.1} parent=1 // pred_check
      _
    $region11: #{tpu_custom_call.1} parent=1 // pred_check_branch
      %18 = sbr.rel (0) target = $region13
    $region12: #{tpu_custom_call.1} parent=1 // pred_region
      _
    $region13: #{tpu_custom_call.1} parent=1 // pred_fallthru
      _
    // Predicated region
    $region14: #{tpu_custom_call.1} parent=1 // pred_check
      _
    $region15: #{tpu_custom_call.1} parent=1 // pred_check_branch
      %20 = sbr.rel (0) target = $region17
    $region16: #{tpu_custom_call.1} parent=1 // pred_region
      _
    $region17: #{tpu_custom_call.1} parent=1 // pred_fallthru
      _
    // Predicated region
    $region18: #{tpu_custom_call.1} parent=1 // pred_check
      _
    $region19: #{tpu_custom_call.1} parent=1 // pred_check_branch
      %22 = sbr.rel (0) target = $region21
    $region20: #{tpu_custom_call.1} parent=1 // pred_region
      _
    $region21: #{tpu_custom_call.1} parent=1 // pred_fallthru
      _
    // Predicated region
    $region22: #{tpu_custom_call.1} parent=1 // pred_check
      _
    $region23: #{tpu_custom_call.1} parent=1 // pred_check_branch
      %24 = sbr.rel (0) target = $region25
    $region24: #{tpu_custom_call.1} parent=1 // pred_region
      _
    $region25: #{tpu_custom_call.1} parent=1 // pred_fallthru
      _
    // Predicated region
    $region26: #{tpu_custom_call.1} parent=1 // pred_check
      _
    $region27: #{tpu_custom_call.1} parent=1 // pred_check_branch
      %26 = sbr.rel (0) target = $region29
    $region28: #{tpu_custom_call.1} parent=1 // pred_region
      _
    $region29: #{tpu_custom_call.1} parent=1 // pred_fallthru
      _
    %v28 = vld [vmem:[%s0] sm:$0xff]
    %v29 = vld [vmem:[%s0 + $0x8] sm:$0xff]
    %vm30 = vcmask 261120
    %v31 = vsel %vm30, %v28, 0.0
    %32 = vadd.xlane.f32.xlu0 %v31
    %v33 = vpop.xlane.xlu0 %32
    %v34 = vsel %vm30, %v29, 0.0
    %35 = vadd.xlane.f32.xlu0 %v34
    %v36 = vpop.xlane.xlu0 %35
    %v37 = vrcp.pop 32.0
    %v38 = vmul.f32 %v33, %v37
    %v39 = vmul.f32 %v36, %v37
    %v40 = vsub.f32 %v28, %v38
    %v41 = vsub.f32 %v29, %v39
    %v42 = vmul.f32 %v40, %v40
    %v43 = vmul.f32 %v41, %v41
    %v44 = vsel %vm30, %v42, 0.0
    %45 = vadd.xlane.f32.xlu0 %v44
    %v46 = vpop.xlane.xlu0 %45
    %v47 = vsel %vm30, %v43, 0.0
    %48 = vadd.xlane.f32.xlu0 %v47
    %v49 = vpop.xlane.xlu0 %48
    %v50 = vmul.f32 %v46, %v37
    %v51 = vmul.f32 %v49, %v37
    %v52 = vadd.f32 %v50, 1e-05
    %v53 = vadd.f32 %v51, 1e-05
    %v54 = vrsqrt.pop %v52
    %v55 = vrsqrt.pop %v53
    %v56 = vmul.f32 %v40, %v54
    %v57 = vmul.f32 %v41, %v55
    %v58 = vld [vmem:[%s1] sm:$0x1]
    %v60 = vlaneseq
    %v61 = vshrl.u32 %v60, 7
    %v62 = vsub.s32 0, %v61
    %v63 = vrot.slane %v58, %v62
    %v65 = vmul.f32 %v56, %v63
    %v66 = vmul.f32 %v57, %v63
    %v67 = vld [vmem:[%s2] sm:$0x1]
    %v69 = vlaneseq
    %v70 = vshrl.u32 %v69, 7
    %v71 = vsub.s32 0, %v70
    %v72 = vrot.slane %v67, %v71
    %v74 = vadd.f32 %v65, %v72
    %v75 = vadd.f32 %v66, %v72
    %v76 = vpack.c.bf16 %v75, %v74
    %v77 = vld [vmem:[%s3] sm:$0xf]
    %v78 = vld [vmem:[%s3 + $0x4] sm:$0xf]
    %v79 = vld [vmem:[%s3 + $0x8] sm:$0xf]
    %v80 = vld [vmem:[%s3 + $0xc] sm:$0xf]
    %v81 = vld [vmem:[%s4] sm:$0x1]
    %v83 = vlaneseq
    %v84 = vshrl.u32 %v83, 7
    %v85 = vsub.s32 0, %v84
    %v86 = vrot.slane %v81, %v85
    %v92 = vunpack.c.l.b16 %v77
    %v93 = vunpack.c.l.b16 %v78
    %v94 = vunpack.c.l.b16 %v79
    %v95 = vunpack.c.l.b16 %v80
    %v96 = vpack.c.b16 %v93, %v92
    %v97 = vpack.c.b16 %v95, %v94
    %v101 = vsel %vm30, %v76, 0
    %103 = vmatprep.subr.bf16.mxu0 0
    %104 = vmatpush1.bf16.msra.mxu0 %v96
    %105 = vmatprep.subr.bf16.mxu0 0
    %106 = vmatpush1.bf16.msra.mxu0 %v97
    %107 = vmatprep.subr.bf16.mxu0 0
    %108 = vmatpush1.bf16.msra.mxu0 0
    %109 = vmatprep.subr.bf16.mxu0 0
    %110 = vmatpush1.bf16.msra.mxu0 0
    %111 = vmatprep.subr.bf16.mxu0 0
    %112 = vmatpush1.bf16.msra.mxu0 0
    %113 = vmatprep.subr.bf16.mxu0 0
    %114 = vmatpush1.bf16.msra.mxu0 0
    %115 = vmatprep.subr.bf16.mxu0 0
    %116 = vmatpush1.bf16.msra.mxu0 0
    %117 = vmatprep.subr.bf16.mxu0 0
    %118 = vmatpush1.bf16.msra.mxu0 0
    %119 = vmatprep.subr.bf16.mxu0 0
    %120 = vmatpush1.bf16.msra.mxu0 0
    %121 = vmatprep.subr.bf16.mxu0 0
    %122 = vmatpush1.bf16.msra.mxu0 0
    %123 = vmatprep.subr.bf16.mxu0 0
    %124 = vmatpush1.bf16.msra.mxu0 0
    %125 = vmatprep.subr.bf16.mxu0 0
    %126 = vmatpush1.bf16.msra.mxu0 0
    %127 = vmatprep.subr.bf16.mxu0 0
    %128 = vmatpush1.bf16.msra.mxu0 0
    %129 = vmatprep.subr.bf16.mxu0 0
    %130 = vmatpush1.bf16.msra.mxu0 0
    %131 = vmatprep.subr.bf16.mxu0 0
    %132 = vmatpush1.bf16.msra.mxu0 0
    %133 = vmatprep.subr.bf16.mxu0 0
    %134 = vmatpush1.bf16.msra.mxu0 0
    %135 = vmatprep.mubr.bf16.mxu0 0
    %136 = vmatmul.mubr.bf16.gmra.mrb[0].mxu0 %v101
    %v137 = vpop.f32.mrb[0].mxu0
    %v138 = vadd.f32 %v86, %v137
    %v139 = vpop.f32.mrb[0].mxu0
    %v140 = vpop.f32.mrb[0].mxu0
    %v141 = vadd.f32 %v86, %v140
    %v142 = vpop.f32.mrb[0].mxu0
    %143 = vdwg.mxu0
    %v144 = vmul.f32 %v138, 0.2
    %v145 = vmul.f32 %v141, 0.2
    %v146 = vmax.f32 %v138, %v144
    %v147 = vmax.f32 %v141, %v145
    %v148 = vpack.c.bf16 %v147, %v146
    %v149 = vld [vmem:[%s5] sm:$0xf]
    %v150 = vld [vmem:[%s5 + $0x4] sm:$0xf]
    %v151 = vld [vmem:[%s5 + $0x8] sm:$0xf]
    %v152 = vld [vmem:[%s5 + $0xc] sm:$0xf]
    %v153 = vld [vmem:[%s5 + $0x10] sm:$0xf]
    %v154 = vld [vmem:[%s5 + $0x14] sm:$0xf]
    %v155 = vld [vmem:[%s5 + $0x18] sm:$0xf]
    %v156 = vld [vmem:[%s5 + $0x1c] sm:$0xf]
    %v157 = vld [vmem:[%s5 + $0x20] sm:$0xf]
    %v158 = vld [vmem:[%s5 + $0x24] sm:$0xf]
    %v159 = vld [vmem:[%s5 + $0x28] sm:$0xf]
    %v160 = vld [vmem:[%s5 + $0x2c] sm:$0xf]
    %v161 = vld [vmem:[%s5 + $0x30] sm:$0xf]
    %v162 = vld [vmem:[%s5 + $0x34] sm:$0xf]
    %v163 = vld [vmem:[%s5 + $0x38] sm:$0xf]
    %v164 = vld [vmem:[%s5 + $0x3c] sm:$0xf]
    %v165 = vld [vmem:[%s6] sm:$0x1]
    %v167 = vlaneseq
    %v168 = vshrl.u32 %v167, 7
    %v169 = vsub.s32 0, %v168
    %v170 = vrot.slane %v165, %v169
    %v188 = vunpack.c.l.b16 %v149
    %v189 = vunpack.c.l.b16 %v150
    %v190 = vunpack.c.l.b16 %v151
    %v191 = vunpack.c.l.b16 %v152
    %v192 = vunpack.c.l.b16 %v153
    %v193 = vunpack.c.l.b16 %v154
    %v194 = vunpack.c.l.b16 %v155
    %v195 = vunpack.c.l.b16 %v156
    %v196 = vunpack.c.l.b16 %v157
    %v197 = vunpack.c.l.b16 %v158
    %v198 = vunpack.c.l.b16 %v159
    %v199 = vunpack.c.l.b16 %v160
    %v200 = vunpack.c.l.b16 %v161
    %v201 = vunpack.c.l.b16 %v162
    %v202 = vunpack.c.l.b16 %v163
    %v203 = vunpack.c.l.b16 %v164
    %v204 = vpack.c.b16 %v189, %v188
    %v205 = vpack.c.b16 %v191, %v190
    %v206 = vpack.c.b16 %v193, %v192
    %v207 = vpack.c.b16 %v195, %v194
    %v208 = vpack.c.b16 %v197, %v196
    %v209 = vpack.c.b16 %v199, %v198
    %v210 = vpack.c.b16 %v201, %v200
    %v211 = vpack.c.b16 %v203, %v202
    %220 = vmatprep.subr.bf16.mxu0 0
    %221 = vmatpush1.bf16.msra.mxu0 %v204
    %222 = vmatprep.subr.bf16.mxu0 0
    %223 = vmatpush1.bf16.msra.mxu0 %v205
    %224 = vmatprep.subr.bf16.mxu0 0
    %225 = vmatpush1.bf16.msra.mxu0 %v206
    %226 = vmatprep.subr.bf16.mxu0 0
    %227 = vmatpush1.bf16.msra.mxu0 %v207
    %228 = vmatprep.subr.bf16.mxu0 0
    %229 = vmatpush1.bf16.msra.mxu0 %v208
    %230 = vmatprep.subr.bf16.mxu0 0
    %231 = vmatpush1.bf16.msra.mxu0 %v209
    %232 = vmatprep.subr.bf16.mxu0 0
    %233 = vmatpush1.bf16.msra.mxu0 %v210
    %234 = vmatprep.subr.bf16.mxu0 0
    %235 = vmatpush1.bf16.msra.mxu0 %v211
    %236 = vmatprep.subr.bf16.mxu0 0
    %237 = vmatpush1.bf16.msra.mxu0 0
    %238 = vmatprep.subr.bf16.mxu0 0
    %239 = vmatpush1.bf16.msra.mxu0 0
    %240 = vmatprep.subr.bf16.mxu0 0
    %241 = vmatpush1.bf16.msra.mxu0 0
    %242 = vmatprep.subr.bf16.mxu0 0
    %243 = vmatpush1.bf16.msra.mxu0 0
    %244 = vmatprep.subr.bf16.mxu0 0
    %245 = vmatpush1.bf16.msra.mxu0 0
    %246 = vmatprep.subr.bf16.mxu0 0
    %247 = vmatpush1.bf16.msra.mxu0 0
    %248 = vmatprep.subr.bf16.mxu0 0
    %249 = vmatpush1.bf16.msra.mxu0 0
    %250 = vmatprep.subr.bf16.mxu0 0
    %251 = vmatpush1.bf16.msra.mxu0 0
    %252 = vmatprep.mubr.bf16.mxu0 0
    %253 = vmatmul.mubr.bf16.gmra.mrb[0].mxu0 %v148
    %v254 = vpop.f32.mrb[0].mxu0
    %v255 = vadd.f32 %v170, %v254
    %v256 = vpop.f32.mrb[0].mxu0
    %v257 = vpop.f32.mrb[0].mxu0
    %v258 = vadd.f32 %v170, %v257
    %v259 = vpop.f32.mrb[0].mxu0
    %260 = vdwg.mxu0
    %261 = vst.msk [vmem:[#allocation2] sm:$0xff] %vm30, %v255
    %262 = vst.msk [vmem:[#allocation2 + $0x8] sm:$0xff] %vm30, %v258
    // Predicated region
    $region30: #{tpu_custom_call.1} parent=1 // pred_check
      _
    $region31: #{tpu_custom_call.1} parent=1 // pred_check_branch
      %264 = sbr.rel (0) target = $region33
    $region32: #{tpu_custom_call.1} parent=1 // pred_region
      %s266 = ssub.s32 256, 256
      %267 = vsyncadd [#allocation3], %s266
      %s268 = sshll.u32 [#allocation2], 4
      %s269 = int_to_ptr.vmem [resolvable:$true] %s268
      %274 = dma.vmem_to_hbm [thread:$0]  %s269, 256, %s7, [#allocation3], 128, 128, 8
    $region33: #{tpu_custom_call.1} parent=1 // pred_fallthru
      _
    // Predicated region
    $region34: #{tpu_custom_call.1} parent=1 // pred_check
      _
    $region35: #{tpu_custom_call.1} parent=1 // pred_check_branch
      %276 = sbr.rel (0) target = $region37
    $region36: #{tpu_custom_call.1} parent=1 // pred_region
      %277 = dma.done [#allocation3], 256
    $region37: #{tpu_custom_call.1} parent=1 // pred_fallthru
      _
    %278 = vsyncpa [#allocation3], 1

// kernel: tpu_custom_call.1
$region0: #{tpu_custom_call.1}
  #allocation0 [shape = 'u32[]', space=smem, size = 0x4, offset = 0x4, fixed_abs, tag = 'smem constant byte address 0x4 - core index']
  #allocation1 [shape = 'u32[144,128]{1,0:T(1,128)}', space=vmem, size = 0x12000, scoped, tag = 'internal scratch']
  %s0 = inlined_call_operand.vmem [shape: f32[16,32], index: 0, kind: input, shape index: {}]
  %s1 = inlined_call_operand.vmem [shape: f32[1,32], index: 1, kind: input, shape index: {}]
  %s2 = inlined_call_operand.vmem [shape: f32[1,32], index: 2, kind: input, shape index: {}]
  %s3 = inlined_call_operand.vmem [shape: bf16[32,128], index: 3, kind: input, shape index: {}]
  %s4 = inlined_call_operand.vmem [shape: f32[1,128], index: 4, kind: input, shape index: {}]
  %s5 = inlined_call_operand.vmem [shape: bf16[128,32], index: 5, kind: input, shape index: {}]
  %s6 = inlined_call_operand.vmem [shape: f32[1,32], index: 6, kind: input, shape index: {}]
  %s7 = inlined_call_operand.hbm [shape: f32[16,32], index: 7, kind: output, shape index: {}]
  %s8 = sld [smem:[#allocation0]]
  $region38: #{tpu_custom_call.1} parent=0
    _
  %s10 = ssub.s32 1, %s8
  %s11 = scalar_select 0, %s10, %s8
  $region1: #{tpu_custom_call.1} parent=0
    #allocation2 [shape = 'u8[8192]{0}', space=vmem, size = 0x2000, scoped, tag = 'output window, operand 0, single buffered']
    #allocation3 [shape = 's32[1]{0}', space=sflag, size = 0x4, scoped, tag = 'scoped memory for tpu_custom_call.1']
    %12 = vsyncpa [#allocation3], 0
    // Predicated region
    $region2: #{tpu_custom_call.1} parent=1 // pred_check
      _
    $region3: #{tpu_custom_call.1} parent=1 // pred_check_branch
      %14 = sbr.rel (0) target = $region5
    $region4: #{tpu_custom_call.1} parent=1 // pred_region
      _
    $region5: #{tpu_custom_call.1} parent=1 // pred_fallthru
      _
    // Predicated region
    $region6: #{tpu_custom_call.1} parent=1 // pred_check
      _
    $region7: #{tpu_custom_call.1} parent=1 // pred_check_branch
      %16 = sbr.rel (0) target = $region9
    $region8: #{tpu_custom_call.1} parent=1 // pred_region
      _
    $region9: #{tpu_custom_call.1} parent=1 // pred_fallthru
      _
    // Predicated region
    $region10: #{tpu_custom_call.1} parent=1 // pred_check
      _
    $region11: #{tpu_custom_call.1} parent=1 // pred_check_branch
      %18 = sbr.rel (0) target = $region13
    $region12: #{tpu_custom_call.1} parent=1 // pred_region
      _
    $region13: #{tpu_custom_call.1} parent=1 // pred_fallthru
      _
    // Predicated region
    $region14: #{tpu_custom_call.1} parent=1 // pred_check
      _
    $region15: #{tpu_custom_call.1} parent=1 // pred_check_branch
      %20 = sbr.rel (0) target = $region17
    $region16: #{tpu_custom_call.1} parent=1 // pred_region
      _
    $region17: #{tpu_custom_call.1} parent=1 // pred_fallthru
      _
    // Predicated region
    $region18: #{tpu_custom_call.1} parent=1 // pred_check
      _
    $region19: #{tpu_custom_call.1} parent=1 // pred_check_branch
      %22 = sbr.rel (0) target = $region21
    $region20: #{tpu_custom_call.1} parent=1 // pred_region
      _
    $region21: #{tpu_custom_call.1} parent=1 // pred_fallthru
      _
    // Predicated region
    $region22: #{tpu_custom_call.1} parent=1 // pred_check
      _
    $region23: #{tpu_custom_call.1} parent=1 // pred_check_branch
      %24 = sbr.rel (0) target = $region25
    $region24: #{tpu_custom_call.1} parent=1 // pred_region
      _
    $region25: #{tpu_custom_call.1} parent=1 // pred_fallthru
      _
    // Predicated region
    $region26: #{tpu_custom_call.1} parent=1 // pred_check
      _
    $region27: #{tpu_custom_call.1} parent=1 // pred_check_branch
      %26 = sbr.rel (0) target = $region29
    $region28: #{tpu_custom_call.1} parent=1 // pred_region
      _
    $region29: #{tpu_custom_call.1} parent=1 // pred_fallthru
      _
    %v28 = vld [vmem:[%s0] sm:$0xff]
    %v29 = vld [vmem:[%s0 + $0x8] sm:$0xff]
    %vm30 = vcmask 261120
    %v31 = vsel %vm30, %v28, 0.0
    %32 = vadd.xlane.f32.xlu0 %v31
    %v33 = vpop.xlane.xlu0 %32
    %v34 = vsel %vm30, %v29, 0.0
    %35 = vadd.xlane.f32.xlu0 %v34
    %v36 = vpop.xlane.xlu0 %35
    %v37 = vrcp.pop 32.0
    %v38 = vmul.f32 %v33, %v37
    %v39 = vmul.f32 %v36, %v37
    %v40 = vsub.f32 %v28, %v38
    %v41 = vsub.f32 %v29, %v39
    %v42 = vmul.f32 %v40, %v40
    %v43 = vmul.f32 %v41, %v41
    %v44 = vsel %vm30, %v42, 0.0
    %45 = vadd.xlane.f32.xlu0 %v44
    %v46 = vpop.xlane.xlu0 %45
    %v47 = vsel %vm30, %v43, 0.0
    %48 = vadd.xlane.f32.xlu0 %v47
    %v49 = vpop.xlane.xlu0 %48
    %v50 = vmul.f32 %v46, %v37
    %v51 = vmul.f32 %v49, %v37
    %v52 = vadd.f32 %v50, 1e-05
    %v53 = vadd.f32 %v51, 1e-05
    %v54 = vrsqrt.pop %v52
    %v55 = vrsqrt.pop %v53
    %v56 = vmul.f32 %v40, %v54
    %v57 = vmul.f32 %v41, %v55
    %v58 = vld [vmem:[%s1] sm:$0x1]
    %v60 = vlaneseq
    %v61 = vshrl.u32 %v60, 7
    %v62 = vsub.s32 0, %v61
    %v63 = vrot.slane %v58, %v62
    %v65 = vmul.f32 %v56, %v63
    %v66 = vmul.f32 %v57, %v63
    %v67 = vld [vmem:[%s2] sm:$0x1]
    %v69 = vlaneseq
    %v70 = vshrl.u32 %v69, 7
    %v71 = vsub.s32 0, %v70
    %v72 = vrot.slane %v67, %v71
    %v74 = vadd.f32 %v65, %v72
    %v75 = vadd.f32 %v66, %v72
    %v76 = vpack.c.bf16 %v75, %v74
    %v77 = vld [vmem:[%s3] sm:$0xf]
    %v78 = vld [vmem:[%s3 + $0x4] sm:$0xf]
    %v79 = vld [vmem:[%s3 + $0x8] sm:$0xf]
    %v80 = vld [vmem:[%s3 + $0xc] sm:$0xf]
    %v81 = vld [vmem:[%s4] sm:$0x1]
    %v83 = vlaneseq
    %v84 = vshrl.u32 %v83, 7
    %v85 = vsub.s32 0, %v84
    %v86 = vrot.slane %v81, %v85
    %v92 = vunpack.c.l.b16 %v77
    %v93 = vunpack.c.l.b16 %v78
    %v94 = vunpack.c.l.b16 %v79
    %v95 = vunpack.c.l.b16 %v80
    %v96 = vpack.c.b16 %v93, %v92
    %v97 = vpack.c.b16 %v95, %v94
    %v101 = vsel %vm30, %v76, 0
    %103 = vmatprep.subr.bf16.mxu0 0
    %104 = vmatpush1.bf16.msra.mxu0 %v96
    %105 = vmatprep.subr.bf16.mxu0 0
    %106 = vmatpush1.bf16.msra.mxu0 %v97
    %107 = vmatprep.subr.bf16.mxu0 0
    %108 = vmatpush1.bf16.msra.mxu0 0
    %109 = vmatprep.subr.bf16.mxu0 0
    %110 = vmatpush1.bf16.msra.mxu0 0
    %111 = vmatprep.subr.bf16.mxu0 0
    %112 = vmatpush1.bf16.msra.mxu0 0
    %113 = vmatprep.subr.bf16.mxu0 0
    %114 = vmatpush1.bf16.msra.mxu0 0
    %115 = vmatprep.subr.bf16.mxu0 0
    %116 = vmatpush1.bf16.msra.mxu0 0
    %117 = vmatprep.subr.bf16.mxu0 0
    %118 = vmatpush1.bf16.msra.mxu0 0
    %119 = vmatprep.subr.bf16.mxu0 0
    %120 = vmatpush1.bf16.msra.mxu0 0
    %121 = vmatprep.subr.bf16.mxu0 0
    %122 = vmatpush1.bf16.msra.mxu0 0
    %123 = vmatprep.subr.bf16.mxu0 0
    %124 = vmatpush1.bf16.msra.mxu0 0
    %125 = vmatprep.subr.bf16.mxu0 0
    %126 = vmatpush1.bf16.msra.mxu0 0
    %127 = vmatprep.subr.bf16.mxu0 0
    %128 = vmatpush1.bf16.msra.mxu0 0
    %129 = vmatprep.subr.bf16.mxu0 0
    %130 = vmatpush1.bf16.msra.mxu0 0
    %131 = vmatprep.subr.bf16.mxu0 0
    %132 = vmatpush1.bf16.msra.mxu0 0
    %133 = vmatprep.subr.bf16.mxu0 0
    %134 = vmatpush1.bf16.msra.mxu0 0
    %135 = vmatprep.mubr.bf16.mxu0 0
    %136 = vmatmul.mubr.bf16.gmra.mrb[0].mxu0 %v101
    %v137 = vpop.f32.mrb[0].mxu0
    %v138 = vadd.f32 %v86, %v137
    %v139 = vpop.f32.mrb[0].mxu0
    %v140 = vpop.f32.mrb[0].mxu0
    %v141 = vadd.f32 %v86, %v140
    %v142 = vpop.f32.mrb[0].mxu0
    %143 = vdwg.mxu0
    %v144 = vmul.f32 %v138, 0.2
    %v145 = vmul.f32 %v141, 0.2
    %v146 = vmax.f32 %v138, %v144
    %v147 = vmax.f32 %v141, %v145
    %v148 = vpack.c.bf16 %v147, %v146
    %v149 = vld [vmem:[%s5] sm:$0xf]
    %v150 = vld [vmem:[%s5 + $0x4] sm:$0xf]
    %v151 = vld [vmem:[%s5 + $0x8] sm:$0xf]
    %v152 = vld [vmem:[%s5 + $0xc] sm:$0xf]
    %v153 = vld [vmem:[%s5 + $0x10] sm:$0xf]
    %v154 = vld [vmem:[%s5 + $0x14] sm:$0xf]
    %v155 = vld [vmem:[%s5 + $0x18] sm:$0xf]
    %v156 = vld [vmem:[%s5 + $0x1c] sm:$0xf]
    %v157 = vld [vmem:[%s5 + $0x20] sm:$0xf]
    %v158 = vld [vmem:[%s5 + $0x24] sm:$0xf]
    %v159 = vld [vmem:[%s5 + $0x28] sm:$0xf]
    %v160 = vld [vmem:[%s5 + $0x2c] sm:$0xf]
    %v161 = vld [vmem:[%s5 + $0x30] sm:$0xf]
    %v162 = vld [vmem:[%s5 + $0x34] sm:$0xf]
    %v163 = vld [vmem:[%s5 + $0x38] sm:$0xf]
    %v164 = vld [vmem:[%s5 + $0x3c] sm:$0xf]
    %v165 = vld [vmem:[%s6] sm:$0x1]
    %v167 = vlaneseq
    %v168 = vshrl.u32 %v167, 7
    %v169 = vsub.s32 0, %v168
    %v170 = vrot.slane %v165, %v169
    %v188 = vunpack.c.l.b16 %v149
    %v189 = vunpack.c.l.b16 %v150
    %v190 = vunpack.c.l.b16 %v151
    %v191 = vunpack.c.l.b16 %v152
    %v192 = vunpack.c.l.b16 %v153
    %v193 = vunpack.c.l.b16 %v154
    %v194 = vunpack.c.l.b16 %v155
    %v195 = vunpack.c.l.b16 %v156
    %v196 = vunpack.c.l.b16 %v157
    %v197 = vunpack.c.l.b16 %v158
    %v198 = vunpack.c.l.b16 %v159
    %v199 = vunpack.c.l.b16 %v160
    %v200 = vunpack.c.l.b16 %v161
    %v201 = vunpack.c.l.b16 %v162
    %v202 = vunpack.c.l.b16 %v163
    %v203 = vunpack.c.l.b16 %v164
    %v204 = vpack.c.b16 %v189, %v188
    %v205 = vpack.c.b16 %v191, %v190
    %v206 = vpack.c.b16 %v193, %v192
    %v207 = vpack.c.b16 %v195, %v194
    %v208 = vpack.c.b16 %v197, %v196
    %v209 = vpack.c.b16 %v199, %v198
    %v210 = vpack.c.b16 %v201, %v200
    %v211 = vpack.c.b16 %v203, %v202
    %220 = vmatprep.subr.bf16.mxu0 0
    %221 = vmatpush1.bf16.msra.mxu0 %v204
    %222 = vmatprep.subr.bf16.mxu0 0
    %223 = vmatpush1.bf16.msra.mxu0 %v205
    %224 = vmatprep.subr.bf16.mxu0 0
    %225 = vmatpush1.bf16.msra.mxu0 %v206
    %226 = vmatprep.subr.bf16.mxu0 0
    %227 = vmatpush1.bf16.msra.mxu0 %v207
    %228 = vmatprep.subr.bf16.mxu0 0
    %229 = vmatpush1.bf16.msra.mxu0 %v208
    %230 = vmatprep.subr.bf16.mxu0 0
    %231 = vmatpush1.bf16.msra.mxu0 %v209
    %232 = vmatprep.subr.bf16.mxu0 0
    %233 = vmatpush1.bf16.msra.mxu0 %v210
    %234 = vmatprep.subr.bf16.mxu0 0
    %235 = vmatpush1.bf16.msra.mxu0 %v211
    %236 = vmatprep.subr.bf16.mxu0 0
    %237 = vmatpush1.bf16.msra.mxu0 0
    %238 = vmatprep.subr.bf16.mxu0 0
    %239 = vmatpush1.bf16.msra.mxu0 0
    %240 = vmatprep.subr.bf16.mxu0 0
    %241 = vmatpush1.bf16.msra.mxu0 0
    %242 = vmatprep.subr.bf16.mxu0 0
    %243 = vmatpush1.bf16.msra.mxu0 0
    %244 = vmatprep.subr.bf16.mxu0 0
    %245 = vmatpush1.bf16.msra.mxu0 0
    %246 = vmatprep.subr.bf16.mxu0 0
    %247 = vmatpush1.bf16.msra.mxu0 0
    %248 = vmatprep.subr.bf16.mxu0 0
    %249 = vmatpush1.bf16.msra.mxu0 0
    %250 = vmatprep.subr.bf16.mxu0 0
    %251 = vmatpush1.bf16.msra.mxu0 0
    %252 = vmatprep.mubr.bf16.mxu0 0
    %253 = vmatmul.mubr.bf16.gmra.mrb[0].mxu0 %v148
    %v254 = vpop.f32.mrb[0].mxu0
    %v255 = vadd.f32 %v170, %v254
    %v256 = vpop.f32.mrb[0].mxu0
    %v257 = vpop.f32.mrb[0].mxu0
    %v258 = vadd.f32 %v170, %v257
    %v259 = vpop.f32.mrb[0].mxu0
    %260 = vdwg.mxu0
    %261 = vst.msk [vmem:[#allocation2] sm:$0xff] %vm30, %v255
    %262 = vst.msk [vmem:[#allocation2 + $0x8] sm:$0xff] %vm30, %v258
    // Predicated region
    $region30: #{tpu_custom_call.1} parent=1 // pred_check
      _
    $region31: #{tpu_custom_call.1} parent=1 // pred_check_branch
      %264 = sbr.rel (0) target = $region33
    $region32: #{tpu_custom_call.1} parent=1 // pred_region
      %s266 = ssub.s32 256, 256
      %267 = vsyncadd [#allocation3], %s266
      %s268 = sshll.u32 [#allocation2], 4
      %s269 = int_to_ptr.vmem [resolvable:$true] %s268
      %274 = dma.vmem_to_hbm [thread:$0]  %s269, 256, %s7, [#allocation3], 128, 128, 8
    $region33: #{tpu_custom_call.1} parent=1 // pred_fallthru
      _
    // Predicated region
    $region34: #{tpu_custom_call.1} parent=1 // pred_check
      _
    $region35: #{tpu_custom_call.1} parent=1 // pred_check_branch
      %276 = sbr.rel (0) target = $region37
    $region36: #{tpu_custom_call.1} parent=1 // pred_region
      %277 = dma.done [#allocation3], 256
    $region37: #{tpu_custom_call.1} parent=1 // pred_fallthru
      _
    %278 = vsyncpa [#allocation3], 1

</llo_original>
